<compile_context>
chip_gen: v6e
topology: v6e:2x2x1
jax: 0.10.0
libtpu: 0.0.40
codegen_flags: <defaults>
</compile_context>

<pallas_src>
import functools

import jax
import jax.numpy as jnp
from jax.experimental import pallas as pl
from jax.experimental.pallas import tpu as pltpu


# ----------------------------- helpers ------------------------------------


def _round_up(x: int, m: int) -> int:
    return ((x + m - 1) // m) * m


def _largest_divisor_tile(dim: int, cap: int, align: int) -> int:
    """Largest multiple of `align` that divides `dim` (itself a multiple of
    `align`) and is <= cap."""
    best = align
    t = align
    limit = min(cap, dim)
    while t <= limit:
        if dim % t == 0:
            best = t
        t += align
    return best


def _pick_row_tile(m: int, cap: int) -> int:
    """Sublane-aligned (x8) M tile, minimizing zero-padding of the batch dim."""
    if m <= cap:
        return _round_up(m, 8)
    best_t = cap
    best_pad = _round_up(m, cap) - m
    t = cap - 8
    while t >= cap // 2:
        pad = _round_up(m, t) - m
        if pad < best_pad:
            best_t, best_pad = t, pad
        t -= 8
    return best_t


# ----------------------------- kernels ------------------------------------


def _linear_tiled_kernel(x_ref, w_ref, o_ref):
    """One (tm, tn) output tile, accumulated directly in the resident f32
    output block over the K grid axis (axis 2, innermost, 'arbitrary')."""
    @pl.when(pl.program_id(2) == 0)
    def _():
        o_ref[...] = jnp.zeros_like(o_ref)

    o_ref[...] += jnp.dot(
        x_ref[...], w_ref[...], preferred_element_type=jnp.float32
    )


def _linear_single_kernel(x_ref, w_ref, o_ref):
    """Whole problem in one full-extent block (tiny-problem fast path)."""
    o_ref[...] = jnp.dot(
        x_ref[...], w_ref[...], preferred_element_type=jnp.float32
    )


# ----------------------------- forward ------------------------------------

# ~512K f32 elements total (~2 MiB) -> single-block fast path.
_TINY_ELEMS = 1 << 19


@functools.partial(jax.jit, static_argnames=("n_out",))
def _one_param_forward(x, w_p, *, n_out):
    """x: (M, K) f32.  w_p: (Kp, Np) f32, pre-transposed [K, N] weight padded
    to multiples of 128.  Returns (M, n_out) f32 == x @ W^T."""
    x = x.astype(jnp.float32)
    M, K = x.shape
    Kp, Np = w_p.shape

    # ---------- tiny-problem fast path: one full-extent block, no grid ------
    if M * Kp + Kp * Np + M * Np <= _TINY_ELEMS:
        x_p = x if Kp == K else jnp.pad(x, ((0, 0), (0, Kp - K)))
        out = pl.pallas_call(
            _linear_single_kernel,
            out_shape=jax.ShapeDtypeStruct((M, Np), jnp.float32),
        )(x_p, w_p)
        return out[:, :n_out]

    # ---------- general tiled path ------------------------------------------
    skinny = M <= 64  # GEMV-like: pure weight streaming, maximize tn/tk reuse.
    cap_m, cap_n, cap_k = (64, 1024, 2048) if skinny else (512, 512, 1024)

    tm = _pick_row_tile(M, cap_m)
    tn = _largest_divisor_tile(Np, cap_n, 128)  # divides Np -> no weight re-pad
    tk = _largest_divisor_tile(Kp, cap_k, 128)  # divides Kp -> no weight re-pad

    Mp = _round_up(M, tm)

    # v7x megacore: keep >=2 points on the parallel (i, j) axes so both
    # TensorCores get work; split the N axis when it would collapse to 1x1.
    if (Mp // tm) * (Np // tn) == 1 and tn % 256 == 0:
        tn //= 2

    # Zero-pad the activation (zeros contribute nothing to the dot product).
    x_p = x if (Mp == M and Kp == K) else jnp.pad(x, ((0, Mp - M), (0, Kp - K)))

    grid = (Mp // tm, Np // tn, Kp // tk)  # reduction (K) axis last

    out = pl.pallas_call(
        _linear_tiled_kernel,
        out_shape=jax.ShapeDtypeStruct((Mp, Np), jnp.float32),
        grid_spec=pltpu.PrefetchScalarGridSpec(
            num_scalar_prefetch=0,
            grid=grid,
            in_specs=[
                pl.BlockSpec((tm, tk), lambda i, j, k: (i, k)),
                pl.BlockSpec((tk, tn), lambda i, j, k: (k, j)),
            ],
            out_specs=pl.BlockSpec((tm, tn), lambda i, j, k: (i, j)),
        ),
        compiler_params=pltpu.CompilerParams(
            dimension_semantics=("parallel", "parallel", "arbitrary"),
            # Worst-case working set ~19 MiB (skinny branch); 48 MiB limit is
            # safe on v5e/v6e (128 MiB physical) and v7x (64 MiB physical).
            vmem_limit_bytes=48 * 1024 * 1024,
        ),
    )(x_p, w_p)

    return out[:M, :n_out]


class OneParamPallas:
    """Pallas equivalent of the PyTorch `one_param` module (bias-free Linear)."""

    def __init__(self, weight):
        # weight: (output_size, input_size), PyTorch nn.Linear layout.
        weight = jnp.asarray(weight, jnp.float32)
        self.output_size, self.input_size = weight.shape
        K, N = self.input_size, self.output_size
        Kp, Np = _round_up(K, 128), _round_up(N, 128)

        # One-time transpose + zero-pad to the canonical, lane-dense MXU
        # [K, N] layout.  Done eagerly here (outside the per-call jit) so the
        # forward pass never re-relayouts the weight through HBM.
        w_t = jnp.transpose(weight)
        if (Kp, Np) != (K, N):
            w_t = jnp.pad(w_t, ((0, Kp - K), (0, Np - N)))
        self.w_p = jax.block_until_ready(w_t)

    def __call__(self, x):
        x = jnp.asarray(x)
        lead = x.shape[:-1]
        x2d = x.reshape(-1, self.input_size)
        y2d = _one_param_forward(x2d, self.w_p, n_out=self.output_size)
        return y2d.reshape(*lead, self.output_size)


# ----------------------------- demo / check --------------------------------

if __name__ == "__main__":
    key = jax.random.PRNGKey(0)
    k_x, k_w, k_x2, k_w2 = jax.random.split(key, 4)

    # Shipped small shapes: batch=8, input_size=32, output_size=16
    # (exercises the tiny-problem single-block fast path).
    batch, input_size, output_size = 8, 32, 16
    x = jax.random.normal(k_x, (batch, input_size), dtype=jnp.float32)
    bound = 1.0 / (input_size ** 0.5)  # PyTorch nn.Linear default init range
    weight = jax.random.uniform(
        k_w, (output_size, input_size), dtype=jnp.float32,
        minval=-bound, maxval=bound,
    )

    model = OneParamPallas(weight)
    y = model(x)
    jax.block_until_ready(y)

    y_ref = x @ weight.T
    assert y.shape == (batch, output_size)
    assert jnp.allclose(y, y_ref, atol=1e-5, rtol=1e-5)

    # Second, moderate-size check that exercises the general tiled path
    # (direct-into-output accumulation, lane-dense tiles, parallel M/N grid).
    b2, in2, out2 = 256, 1024, 640
    x2 = jax.random.normal(k_x2, (b2, in2), dtype=jnp.float32)
    w2 = jax.random.uniform(
        k_w2, (out2, in2), dtype=jnp.float32,
        minval=-1.0 / (in2 ** 0.5), maxval=1.0 / (in2 ** 0.5),
    )
    model2 = OneParamPallas(w2)
    y2 = model2(x2)
    jax.block_until_ready(y2)
    y2_ref = x2 @ w2.T
    assert y2.shape == (b2, out2)
    assert jnp.allclose(y2, y2_ref, atol=1e-4, rtol=1e-4)

    print("KERNEL_OK")
</pallas_src>

<mosaic_0001>
module attributes {stable_mosaic.version = 11 : i64} {
  func.func @_linear_single_kernel(%arg0: memref<8x128xf32, #tpu.memory_space<vmem>>, %arg1: memref<128x128xf32, #tpu.memory_space<vmem>>, %arg2: memref<8x128xf32, #tpu.memory_space<vmem>>) attributes {dimension_semantics = [], scalar_prefetch = 0 : i64, scratch_operands = 0 : i64, tpu.core_type = #tpu.core_type<tc>} {
    %c0 = arith.constant 0 : index
    %c0_0 = arith.constant 0 : index
    %0 = vector.load %arg0[%c0, %c0_0] : memref<8x128xf32, #tpu.memory_space<vmem>>, vector<8x128xf32>
    %c0_1 = arith.constant 0 : index
    %c0_2 = arith.constant 0 : index
    %1 = vector.load %arg1[%c0_1, %c0_2] : memref<128x128xf32, #tpu.memory_space<vmem>>, vector<128x128xf32>
    %cst = arith.constant dense<0.000000e+00> : vector<8x128xf32>
    %2 = tpu.matmul %0, %1, %cst {dimension_numbers = #tpu.dot_dimension_numbers<[1], [0], [0], [1], [0, 0, 1, 1], [], []>} : vector<8x128xf32>, vector<128x128xf32>, vector<8x128xf32> -> vector<8x128xf32>
    %c0_3 = arith.constant 0 : index
    %c0_4 = arith.constant 0 : index
    %3 = vector.load %arg2[%c0_3, %c0_4] : memref<8x128xf32, #tpu.memory_space<vmem>>, vector<8x128xf32>
    tpu.vector_store %arg2[%c0_3, %c0_4], %2 {strides = array<i32>} : memref<8x128xf32, #tpu.memory_space<vmem>>, vector<8x128xf32>,
    return
  }
}

</mosaic_0001>

<llo_original>
// kernel: _one_param_forward.1
$region0: #{_one_param_forward.1}
  #allocation0 [shape = 'u32[]', space=smem, size = 0x4, offset = 0x4, fixed_abs, tag = 'smem constant byte address 0x4 - core index']
  #allocation1 [shape = 'u32[144,128]{1,0:T(1,128)}', space=vmem, size = 0x12000, scoped, tag = 'internal scratch']
  %s0 = inlined_call_operand.vmem [shape: f32[8,128], index: 0, kind: input, shape index: {}]
  %s1 = inlined_call_operand.hbm [shape: f32[128,128], index: 1, kind: input, shape index: {}]
  %s2 = inlined_call_operand.hbm [shape: f32[8,128], index: 2, kind: output, shape index: {}]
  %s3 = sld [smem:[#allocation0]]
  $region22: #{_one_param_forward.1} parent=0
    _
  %s5 = ssub.s32 1, %s3
  %s6 = scalar_select 0, %s5, %s3
  $region1: #{_one_param_forward.1} parent=0
    #allocation2 [shape = 'u8[65536]{0}', space=vmem, size = 0x10000, scoped, tag = 'input window, operand 1, single buffered']
    #allocation3 [shape = 's32[1]{0}', space=sflag, size = 0x4, scoped, tag = 'scoped memory for _one_param_forward.1']
    #allocation4 [shape = 's32[1]{0}', space=sflag, size = 0x4, scoped, tag = 'scoped memory for _one_param_forward.1']
    #allocation5 [shape = 'u8[4096]{0}', space=vmem, size = 0x1000, scoped, tag = 'output window, operand 0, single buffered']
    %7 = vsyncpa [#allocation3], 0
    %8 = vsyncpa [#allocation4], 0
    // Predicated region
    $region2: #{_one_param_forward.1} parent=1 // pred_check
      _
    $region3: #{_one_param_forward.1} parent=1 // pred_check_branch
      %10 = sbr.rel (0) target = $region5
    $region4: #{_one_param_forward.1} parent=1 // pred_region
      _
    $region5: #{_one_param_forward.1} parent=1 // pred_fallthru
      _
    // Predicated region
    $region6: #{_one_param_forward.1} parent=1 // pred_check
      _
    $region7: #{_one_param_forward.1} parent=1 // pred_check_branch
      %12 = sbr.rel (0) target = $region9
    $region8: #{_one_param_forward.1} parent=1 // pred_region
      %s14 = ssub.s32 2048, 2048
      %15 = vsyncadd [#allocation3], %s14
      %s16 = sshll.u32 [#allocation2], 4
      %s17 = int_to_ptr.vmem [resolvable:$true] %s16
      %22 = dma.hbm_to_vmem [thread:$0]  %s1, 2048, %s17, [#allocation3], 128, 128, 8
    $region9: #{_one_param_forward.1} parent=1 // pred_fallthru
      _
    // Predicated region
    $region10: #{_one_param_forward.1} parent=1 // pred_check
      _
    $region11: #{_one_param_forward.1} parent=1 // pred_check_branch
      %24 = sbr.rel (0) target = $region13
    $region12: #{_one_param_forward.1} parent=1 // pred_region
      %25 = dma.done [#allocation3], 2048
    $region13: #{_one_param_forward.1} parent=1 // pred_fallthru
      _
    %v26 = vld [vmem:[%s0] sm:$0xff]
    %v27 = vld [vmem:[#allocation2] sm:$0xff]
    %v28 = vld [vmem:[#allocation2 + $0x8] sm:$0xff]
    %v29 = vld [vmem:[#allocation2 + $0x10] sm:$0xff]
    %v30 = vld [vmem:[#allocation2 + $0x18] sm:$0xff]
    %v31 = vld [vmem:[#allocation2 + $0x20] sm:$0xff]
    %v32 = vld [vmem:[#allocation2 + $0x28] sm:$0xff]
    %v33 = vld [vmem:[#allocation2 + $0x30] sm:$0xff]
    %v34 = vld [vmem:[#allocation2 + $0x38] sm:$0xff]
    %v35 = vld [vmem:[#allocation2 + $0x40] sm:$0xff]
    %v36 = vld [vmem:[#allocation2 + $0x48] sm:$0xff]
    %v37 = vld [vmem:[#allocation2 + $0x50] sm:$0xff]
    %v38 = vld [vmem:[#allocation2 + $0x58] sm:$0xff]
    %v39 = vld [vmem:[#allocation2 + $0x60] sm:$0xff]
    %v40 = vld [vmem:[#allocation2 + $0x68] sm:$0xff]
    %v41 = vld [vmem:[#allocation2 + $0x70] sm:$0xff]
    %v42 = vld [vmem:[#allocation2 + $0x78] sm:$0xff]
    %43 = vmatprep.subr.mxu0 0.0
    %44 = vmatpush1.msra.mxu0 %v42
    %45 = vmatprep.subr.mxu0 0.0
    %46 = vmatpush1.msra.mxu0 %v41
    %47 = vmatprep.subr.mxu0 0.0
    %48 = vmatpush1.msra.mxu0 %v40
    %49 = vmatprep.subr.mxu0 0.0
    %50 = vmatpush1.msra.mxu0 %v39
    %51 = vmatprep.subr.mxu0 0.0
    %52 = vmatpush1.msra.mxu0 %v38
    %53 = vmatprep.subr.mxu0 0.0
    %54 = vmatpush1.msra.mxu0 %v37
    %55 = vmatprep.subr.mxu0 0.0
    %56 = vmatpush1.msra.mxu0 %v36
    %57 = vmatprep.subr.mxu0 0.0
    %58 = vmatpush1.msra.mxu0 %v35
    %59 = vmatprep.subr.mxu0 0.0
    %60 = vmatpush1.msra.mxu0 %v34
    %61 = vmatprep.subr.mxu0 0.0
    %62 = vmatpush1.msra.mxu0 %v33
    %63 = vmatprep.subr.mxu0 0.0
    %64 = vmatpush1.msra.mxu0 %v32
    %65 = vmatprep.subr.mxu0 0.0
    %66 = vmatpush1.msra.mxu0 %v31
    %67 = vmatprep.subr.mxu0 0.0
    %68 = vmatpush1.msra.mxu0 %v30
    %69 = vmatprep.subr.mxu0 0.0
    %70 = vmatpush1.msra.mxu0 %v29
    %71 = vmatprep.subr.mxu0 0.0
    %72 = vmatpush1.msra.mxu0 %v28
    %73 = vmatprep.subr.mxu0 0.0
    %74 = vmatpush1.msra.mxu0 %v27
    %75 = vmatprep.subr.mxu0 0.0
    %76 = vmatpush2.msra.mxu0 0.0
    %77 = vmatprep.subr.mxu0 0.0
    %78 = vmatpush2.msra.mxu0 0.0
    %79 = vmatprep.subr.mxu0 0.0
    %80 = vmatpush2.msra.mxu0 0.0
    %81 = vmatprep.subr.mxu0 0.0
    %82 = vmatpush2.msra.mxu0 0.0
    %83 = vmatprep.subr.mxu0 0.0
    %84 = vmatpush2.msra.mxu0 0.0
    %85 = vmatprep.subr.mxu0 0.0
    %86 = vmatpush2.msra.mxu0 0.0
    %87 = vmatprep.subr.mxu0 0.0
    %88 = vmatpush2.msra.mxu0 0.0
    %89 = vmatprep.subr.mxu0 0.0
    %90 = vmatpush2.msra.mxu0 0.0
    %91 = vmatprep.subr.mxu0 0.0
    %92 = vmatpush2.msra.mxu0 0.0
    %93 = vmatprep.subr.mxu0 0.0
    %94 = vmatpush2.msra.mxu0 0.0
    %95 = vmatprep.subr.mxu0 0.0
    %96 = vmatpush2.msra.mxu0 0.0
    %97 = vmatprep.subr.mxu0 0.0
    %98 = vmatpush2.msra.mxu0 0.0
    %99 = vmatprep.subr.mxu0 0.0
    %100 = vmatpush2.msra.mxu0 0.0
    %101 = vmatprep.subr.mxu0 0.0
    %102 = vmatpush2.msra.mxu0 0.0
    %103 = vmatprep.subr.mxu0 0.0
    %104 = vmatpush2.msra.mxu0 0.0
    %105 = vmatprep.subr.mxu0 0.0
    %106 = vmatpush2.msra.mxu0 0.0
    %107 = vmatprep.mubr.f32.mxu0 0.0
    %108 = vmatmul.mubr.f32.gmra.mxu0 %v26
    %v109 = vpop.f32.mrf.mxu0
    %v110 = vadd.f32 0.0, %v109
    %v111 = vpop.f32.mrf.mxu0
    %112 = vdwg.mxu0
    %113 = vst [vmem:[#allocation5] sm:$0xff] %v110
    // Predicated region
    $region14: #{_one_param_forward.1} parent=1 // pred_check
      _
    $region15: #{_one_param_forward.1} parent=1 // pred_check_branch
      %115 = sbr.rel (0) target = $region17
    $region16: #{_one_param_forward.1} parent=1 // pred_region
      %s117 = ssub.s32 128, 128
      %118 = vsyncadd [#allocation4], %s117
      %s120 = sshll.u32 [#allocation5], 4
      %s121 = int_to_ptr.vmem [resolvable:$true] %s120
      %123 = dma.vmem_to_hbm [thread:$0]  %s121, 128, %s2, [#allocation4]
    $region17: #{_one_param_forward.1} parent=1 // pred_fallthru
      _
    // Predicated region
    $region18: #{_one_param_forward.1} parent=1 // pred_check
      _
    $region19: #{_one_param_forward.1} parent=1 // pred_check_branch
      %125 = sbr.rel (0) target = $region21
    $region20: #{_one_param_forward.1} parent=1 // pred_region
      %126 = dma.done [#allocation4], 128
    $region21: #{_one_param_forward.1} parent=1 // pred_fallthru
      _
    %127 = vsyncpa [#allocation3], 1
    %128 = vsyncpa [#allocation4], 1

</llo_original>
